<compile_context>
chip_gen: v5e
topology: v5e:2x2
jax: 0.10.0
libtpu: 0.0.40
codegen_flags: <defaults>
</compile_context>

<pallas_src>
import jax
import jax.numpy as jnp
from jax.experimental import pallas as pl
from jax.experimental.pallas import tpu as pltpu

LANE = 512      # lane-dense column width (multiple of 128)
SUB = 8         # sublane quantum
TM_MAX = 1024   # max rows per grid step  -> 512K elements / ~3 MiB HBM per step


def linear_kernel(x_ref, w_ref, b_ref, o_ref):
    # x_ref: (2, tm, LANE) f32 VMEM — x_ref[0] = feature 0 slab, x_ref[1] = feature 1 slab
    # w_ref: (2,)  f32 SMEM          — (w0, w1)
    # b_ref: (1,)  f32 SMEM
    # o_ref: (tm, LANE) f32 VMEM
    w0 = w_ref[0]
    w1 = w_ref[1]
    bias = b_ref[0]
    # Dense VPU multiply-adds; scalar operands broadcast across all lanes/sublanes.
    o_ref[...] = x_ref[0] * w0 + x_ref[1] * w1 + bias


def _round_up(a, b):
    return (a + b - 1) // b * b


def net_model_forward(x, w_t, b):
    """x: (N, 2) f32, w_t: (2, 1) f32 (W transposed), b: (1,) f32 -> (N, 1) f32."""
    n, k = x.shape
    assert k == 2 and w_t.shape == (2, 1) and b.shape == (1,)
    x = x.astype(jnp.float32)

    # --- tile sizing (rows of LANE samples each) ---------------------------
    r0 = pl.cdiv(n, LANE)                    # rows needed to hold N samples
    r8 = _round_up(max(r0, SUB), SUB)        # sublane-aligned row count
    if r8 <= TM_MAX:
        if r8 >= 2 * SUB:
            # Split into (at least) 2 grid steps so both v7x TensorCores get work.
            tm = _round_up(pl.cdiv(r8, 2), SUB)
        else:
            tm = r8
    else:
        tm = TM_MAX
    r_pad = _round_up(r8, tm)                # always a whole number of tiles
    n_pad = r_pad * LANE
    grid_r = r_pad // tm

    # --- layout plumbing (one fused XLA copy: pad + de-interleave + reshape) ---
    xp = x if n_pad == n else jnp.pad(x, ((0, n_pad - n), (0, 0)))
    x3 = xp.T.reshape(2, r_pad, LANE)        # (2, R, 512): dense feature slabs
    w_vec = w_t.reshape(2)                   # SMEM scalars
    b_vec = b.astype(jnp.float32)

    out = pl.pallas_call(
        linear_kernel,
        out_shape=jax.ShapeDtypeStruct((r_pad, LANE), jnp.float32),
        grid=(grid_r,),
        in_specs=[
            pl.BlockSpec((2, tm, LANE), lambda i: (0, i, 0)),      # x slabs
            pl.BlockSpec(memory_space=pltpu.MemorySpace.SMEM),     # w scalars
            pl.BlockSpec(memory_space=pltpu.MemorySpace.SMEM),     # b scalar
        ],
        out_specs=pl.BlockSpec((tm, LANE), lambda i: (i, 0)),
        compiler_params=pltpu.CompilerParams(
            dimension_semantics=("parallel",),        # shard steps over TCs (v7x)
            vmem_limit_bytes=32 * 1024 * 1024,        # 12 MiB dbl-buffered + headroom
        ),
        cost_estimate=pl.CostEstimate(
            flops=3 * n, transcendentals=0, bytes_accessed=12 * n),
    )(x3, w_vec, b_vec)

    # Metadata-only reshape back to (N, 1); slice only if padding was added.
    y = out.reshape(-1)
    if n_pad != n:
        y = y[:n]
    return y.reshape(n, 1)


def reference_forward(x, w_t, b):
    return x @ w_t + b


if __name__ == "__main__":
    key = jax.random.PRNGKey(0)
    kx, kw, kb = jax.random.split(key, 3)

    # Small deterministic example consistent with Linear(in=2, out=1).
    N, IN_F, OUT_F = 8, 2, 1
    x = jax.random.normal(kx, (N, IN_F), dtype=jnp.float32)

    # Deterministic parameter init (mimic nn.Linear uniform(-1/sqrt(in), 1/sqrt(in))).
    bound = 1.0 / jnp.sqrt(jnp.float32(IN_F))
    w_t = jax.random.uniform(kw, (IN_F, OUT_F), jnp.float32, -bound, bound)  # W^T
    b = jax.random.uniform(kb, (OUT_F,), jnp.float32, -bound, bound)

    out = net_model_forward(x, w_t, b)
    out = jax.block_until_ready(out)

    ref = reference_forward(x, w_t, b)
    assert out.shape == (N, OUT_F)
    assert jnp.allclose(out, ref, atol=1e-5, rtol=1e-5), (out, ref)
    print("KERNEL_OK")
</pallas_src>

<mosaic_0001>
module attributes {stable_mosaic.version = 11 : i64} {
  func.func @linear_kernel(%arg0: i32, %arg1: memref<2x8x512xf32, #tpu.memory_space<vmem>>, %arg2: memref<2xf32, #tpu.memory_space<smem>>, %arg3: memref<1xf32, #tpu.memory_space<smem>>, %arg4: memref<8x512xf32, #tpu.memory_space<vmem>>) attributes {dimension_semantics = [#tpu.dimension_semantics<parallel>], iteration_bounds = array<i64: 1>, scalar_prefetch = 0 : i64, scratch_operands = 0 : i64, tpu.core_type = #tpu.core_type<tc>, window_params = [{transform_indices = @transform_0, window_bounds = array<i64: 2, 8, 512>}, {transform_indices = @transform_1, window_bounds = array<i64: 2>}, {transform_indices = @transform_2, window_bounds = array<i64: 1>}, {transform_indices = @transform_3, window_bounds = array<i64: 8, 512>}]} {
    %c0 = arith.constant 0 : index
    %0 = memref.load %arg2[%c0] : memref<2xf32, #tpu.memory_space<smem>>
    %c1 = arith.constant 1 : index
    %1 = memref.load %arg2[%c1] : memref<2xf32, #tpu.memory_space<smem>>
    %c0_0 = arith.constant 0 : index
    %2 = memref.load %arg3[%c0_0] : memref<1xf32, #tpu.memory_space<smem>>
    %c0_1 = arith.constant 0 : index
    %c0_2 = arith.constant 0 : index
    %c0_3 = arith.constant 0 : index
    %3 = vector.load %arg1[%c0_1, %c0_2, %c0_3] : memref<2x8x512xf32, #tpu.memory_space<vmem>>, vector<1x8x512xf32>
    %4 = vector.shape_cast %3 : vector<1x8x512xf32> to vector<8x512xf32>
    %5 = vector.broadcast %0 : f32 to vector<8x512xf32>
    %6 = arith.mulf %4, %5 : vector<8x512xf32>
    %c1_4 = arith.constant 1 : index
    %c0_5 = arith.constant 0 : index
    %c0_6 = arith.constant 0 : index
    %7 = vector.load %arg1[%c1_4, %c0_5, %c0_6] : memref<2x8x512xf32, #tpu.memory_space<vmem>>, vector<1x8x512xf32>
    %8 = vector.shape_cast %7 : vector<1x8x512xf32> to vector<8x512xf32>
    %9 = vector.broadcast %1 : f32 to vector<8x512xf32>
    %10 = arith.mulf %8, %9 : vector<8x512xf32>
    %11 = arith.addf %6, %10 : vector<8x512xf32>
    %12 = vector.broadcast %2 : f32 to vector<8x512xf32>
    %13 = arith.addf %11, %12 : vector<8x512xf32>
    %c0_7 = arith.constant 0 : index
    %c0_8 = arith.constant 0 : index
    %14 = vector.load %arg4[%c0_7, %c0_8] : memref<8x512xf32, #tpu.memory_space<vmem>>, vector<8x512xf32>
    tpu.vector_store %arg4[%c0_7, %c0_8], %13 {strides = array<i32>} : memref<8x512xf32, #tpu.memory_space<vmem>>, vector<8x512xf32>,
    return
  }
  func.func @transform_0(%arg0: i32) -> (i32, i32, i32) {
    %c0_i32 = arith.constant 0 : i32
    %c0_i32_0 = arith.constant 0 : i32
    %c0_i32_1 = arith.constant 0 : i32
    return %c0_i32, %arg0, %c0_i32_0 : i32, i32, i32
  }
  func.func @transform_1(%arg0: i32) -> i32 {
    %c0_i32 = arith.constant 0 : i32
    %c0_i32_0 = arith.constant 0 : i32
    return %c0_i32 : i32
  }
  func.func @transform_2(%arg0: i32) -> i32 {
    %c0_i32 = arith.constant 0 : i32
    %c0_i32_0 = arith.constant 0 : i32
    return %c0_i32 : i32
  }
  func.func @transform_3(%arg0: i32) -> (i32, i32) {
    %c0_i32 = arith.constant 0 : i32
    %c0_i32_0 = arith.constant 0 : i32
    return %arg0, %c0_i32 : i32, i32
  }
}

</mosaic_0001>

<llo_original>
// kernel: tpu_custom_call.1
$region0: #{tpu_custom_call.1}
  #allocation0 [shape = 'u32[]', space=smem, size = 0x4, offset = 0x4, fixed_abs, tag = 'smem constant byte address 0x4 - core index']
  #allocation1 [shape = 'u32[72,128]{1,0:T(1,128)}', space=vmem, size = 0x9000, scoped, tag = 'internal scratch']
  #allocation2 [shape = 'f32[1]{0:T(128)S(6)}', space=smem, size = 0x200, scoped, tag = 'scoped memory for tpu_custom_call.1']
  %s0 = inlined_call_operand.hbm [shape: f32[2,8,512], index: 0, kind: input, shape index: {}]
  %s1 = inlined_call_operand.vmem [shape: f32[2], index: 1, kind: input, shape index: {}]
  %s2 = inlined_call_operand.<no memory space> [shape: f32[1], index: 2, kind: input, shape index: {}]
  %s3 = inlined_call_operand.hbm [shape: f32[8,512], index: 3, kind: output, shape index: {}]
  %s4 = sld [smem:[#allocation0]]
  $region30: #{tpu_custom_call.1} parent=0
    _
  %s6 = ssub.s32 1, %s4
  %s7 = scalar_select 0, %s6, %s4
  %8 = sst [smem:[#allocation2]] %s2
  $region1: #{tpu_custom_call.1} parent=0
    #allocation3 [shape = 'u8[32768]{0}', space=vmem, size = 0x8000, scoped, tag = 'input window, operand 0, single buffered']
    #allocation4 [shape = 's32[1]{0}', space=sflag, size = 0x4, scoped, tag = 'scoped memory for tpu_custom_call.1']
    #allocation5 [shape = 's32[1]{0}', space=sflag, size = 0x4, scoped, tag = 'scoped memory for tpu_custom_call.1']
    #allocation6 [shape = 's32[1]{0}', space=sflag, size = 0x4, scoped, tag = 'scoped memory for tpu_custom_call.1']
    #allocation7 [shape = 'u8[512]{0}', space=smem, size = 0x200, scoped, tag = 'input window, operand 1, single buffered']
    #allocation8 [shape = 'u8[16384]{0}', space=vmem, size = 0x4000, scoped, tag = 'output window, operand 0, single buffered']
    %9 = vsyncpa [#allocation4], 0
    %10 = vsyncpa [#allocation6], 0
    %11 = vsyncpa [#allocation5], 0
    // Predicated region
    $region2: #{tpu_custom_call.1} parent=1 // pred_check
      _
    $region3: #{tpu_custom_call.1} parent=1 // pred_check_branch
      %13 = sbr.rel (0) target = $region5
    $region4: #{tpu_custom_call.1} parent=1 // pred_region
      %15 = vsyncadd [#allocation4], 0
      %s16 = sshll.u32 %s0, 4
      %s17 = int_to_ptr.hbm [resolvable:$true] %s16
      %s18 = sshll.u32 [#allocation3], 4
      %s19 = int_to_ptr.vmem [resolvable:$true] %s18
      %24 = dma.hbm_to_vmem [thread:$0]  %s17, 1024, %s19, [#allocation4], 512, 512, 32
    $region5: #{tpu_custom_call.1} parent=1 // pred_fallthru
      _
    // Predicated region
    $region6: #{tpu_custom_call.1} parent=1 // pred_check
      _
    $region7: #{tpu_custom_call.1} parent=1 // pred_check_branch
      %26 = sbr.rel (0) target = $region9
    $region8: #{tpu_custom_call.1} parent=1 // pred_region
      %28 = vsyncadd [#allocation6], 0
      %s30 = sshll.u32 %s1, 4
      %s31 = int_to_ptr.vmem [resolvable:$true] %s30
      %33 = dma.vmem_to_smem %s31, 16, [#allocation7], [#allocation6]
    $region9: #{tpu_custom_call.1} parent=1 // pred_fallthru
      _
    // Predicated region
    $region10: #{tpu_custom_call.1} parent=1 // pred_check
      _
    $region11: #{tpu_custom_call.1} parent=1 // pred_check_branch
      %35 = sbr.rel (0) target = $region13
    $region12: #{tpu_custom_call.1} parent=1 // pred_region
      _
    $region13: #{tpu_custom_call.1} parent=1 // pred_fallthru
      _
    // Predicated region
    $region14: #{tpu_custom_call.1} parent=1 // pred_check
      _
    $region15: #{tpu_custom_call.1} parent=1 // pred_check_branch
      %37 = sbr.rel (0) target = $region17
    $region16: #{tpu_custom_call.1} parent=1 // pred_region
      %39 = dma.done [#allocation4], 1024
    $region17: #{tpu_custom_call.1} parent=1 // pred_fallthru
      _
    // Predicated region
    $region18: #{tpu_custom_call.1} parent=1 // pred_check
      _
    $region19: #{tpu_custom_call.1} parent=1 // pred_check_branch
      %41 = sbr.rel (0) target = $region21
    $region20: #{tpu_custom_call.1} parent=1 // pred_region
      %43 = dma.done [#allocation6], 16
    $region21: #{tpu_custom_call.1} parent=1 // pred_fallthru
      _
    %44 = sfence
    %s45 = sld [smem:[#allocation7]]
    %s46 = sld [smem:[#allocation7 + $0x1]]
    %s47 = sld [smem:[#allocation2]]
    %v48 = vld [vmem:[#allocation3] sm:$0xff]
    %v49 = vld [vmem:[#allocation3 + $0x8] sm:$0xff]
    %v50 = vld [vmem:[#allocation3 + $0x10] sm:$0xff]
    %v51 = vld [vmem:[#allocation3 + $0x18] sm:$0xff]
    %v52 = vstv %s45
    %v53 = vmul.f32 %v48, %v52
    %v54 = vmul.f32 %v49, %v52
    %v55 = vmul.f32 %v50, %v52
    %v56 = vmul.f32 %v51, %v52
    %s57 = scalar_lea.vmem [#allocation3], 32
    %v58 = vld [vmem:[%s57] sm:$0xff]
    %v59 = vld [vmem:[%s57 + $0x8] sm:$0xff]
    %v60 = vld [vmem:[%s57 + $0x10] sm:$0xff]
    %v61 = vld [vmem:[%s57 + $0x18] sm:$0xff]
    %v62 = vstv %s46
    %v63 = vmul.f32 %v58, %v62
    %v64 = vmul.f32 %v59, %v62
    %v65 = vmul.f32 %v60, %v62
    %v66 = vmul.f32 %v61, %v62
    %v67 = vadd.f32 %v53, %v63
    %v68 = vadd.f32 %v54, %v64
    %v69 = vadd.f32 %v55, %v65
    %v70 = vadd.f32 %v56, %v66
    %v71 = vstv %s47
    %v72 = vadd.f32 %v67, %v71
    %v73 = vadd.f32 %v68, %v71
    %v74 = vadd.f32 %v69, %v71
    %v75 = vadd.f32 %v70, %v71
    %76 = vst [vmem:[#allocation8] sm:$0xff] %v72
    %77 = vst [vmem:[#allocation8 + $0x8] sm:$0xff] %v73
    %78 = vst [vmem:[#allocation8 + $0x10] sm:$0xff] %v74
    %79 = vst [vmem:[#allocation8 + $0x18] sm:$0xff] %v75
    // Predicated region
    $region22: #{tpu_custom_call.1} parent=1 // pred_check
      _
    $region23: #{tpu_custom_call.1} parent=1 // pred_check_branch
      %81 = sbr.rel (0) target = $region25
    $region24: #{tpu_custom_call.1} parent=1 // pred_region
      %83 = vsyncadd [#allocation5], 0
      %s85 = sshll.u32 [#allocation8], 4
      %s86 = int_to_ptr.vmem [resolvable:$true] %s85
      %s87 = sshll.u32 %s3, 4
      %s88 = int_to_ptr.hbm [resolvable:$true] %s87
      %90 = dma.vmem_to_hbm [thread:$0]  %s86, 512, %s88, [#allocation5]
    $region25: #{tpu_custom_call.1} parent=1 // pred_fallthru
      _
    // Predicated region
    $region26: #{tpu_custom_call.1} parent=1 // pred_check
      _
    $region27: #{tpu_custom_call.1} parent=1 // pred_check_branch
      %92 = sbr.rel (0) target = $region29
    $region28: #{tpu_custom_call.1} parent=1 // pred_region
      %94 = dma.done [#allocation5], 512
    $region29: #{tpu_custom_call.1} parent=1 // pred_fallthru
      _
    %95 = vsyncpa [#allocation4], 1
    %96 = vsyncpa [#allocation5], 1
    %97 = vsyncpa [#allocation6], 1

</llo_original>
